<compile_context>
chip_gen: v6e
topology: v6e:2x2x1
jax: 0.10.0
libtpu: 0.0.40
codegen_flags: <defaults>
</compile_context>

<pallas_src>
import math

import jax
import jax.numpy as jnp
from jax.experimental import pallas as pl
from jax.experimental.pallas import tpu as pltpu


def _rope_kernel(x_ref, cos_ref, sin_ref, o_ref):
    x = x_ref[...]                                    # (bh_t, s_t, D), interleaved pairs
    D = x.shape[-1]

    # Adjacent-pair swap: y[..., 2i] = x[..., 2i+1], y[..., 2i+1] = x[..., 2i].
    # Two lane rotations (XLU) + a parity select (VPU).
    fwd = pltpu.roll(x, shift=1, axis=2)              # fwd[j] = x[j-1]
    bwd = pltpu.roll(x, shift=D - 1, axis=2)          # bwd[j] = x[(j+1) % D]
    lane = jax.lax.broadcasted_iota(jnp.int32, x.shape, dimension=2)
    x_swap = jnp.where((lane & 1) == 0, bwd, fwd)

    cos = cos_ref[...][None].astype(jnp.float32)      # (1, s_t, D), duplicated per pair
    sin = sin_ref[...][None].astype(jnp.float32)      # (1, s_t, D), sign folded in
    out = x.astype(jnp.float32) * cos + x_swap.astype(jnp.float32) * sin
    o_ref[...] = out.astype(o_ref.dtype)


def _pick_s_tile(S: int, cap: int = 512) -> int:
    """Largest divisor of S that is a multiple of 8 and <= cap (else full S)."""
    if S <= cap:
        return S
    best = S
    for t in range(8, cap + 1, 8):
        if S % t == 0:
            best = t
    return best


def _pick_bh_tile(BH: int, s_tile: int, D: int, itemsize: int, n_s: int,
                  target_bytes: int = 1 << 20) -> int:
    """Largest divisor of BH whose block fits target, keeping >=2 grid steps."""
    best = 1
    for t in range(1, BH + 1):
        if BH % t == 0 and t * s_tile * D * itemsize <= target_bytes:
            best = t
    # Keep at least two grid steps (v7x has 2 TensorCores) when there is work to split.
    while best > 1 and (BH // best) * n_s < 2:
        best -= 1
        while best > 1 and BH % best != 0:
            best -= 1
    return best


class RotatoryPositionalEncoding:
    """JAX/Pallas port of the PyTorch module; tables built deterministically."""

    def __init__(self, model_dimension: int, sequence_lenght_limit: int,
                 scaling_factor: float = 10000.0):
        freqs = jnp.exp(
            -jnp.arange(0, model_dimension, 2, dtype=jnp.float32)
            * (math.log(scaling_factor) / model_dimension))
        theta = jnp.outer(
            jnp.arange(sequence_lenght_limit, dtype=jnp.float32), freqs)
        # torch.polar(ones_like(theta), theta) == cos(theta) + i*sin(theta)
        self.cos = jnp.cos(theta)   # (L, model_dimension // 2)
        self.sin = jnp.sin(theta)   # (L, model_dimension // 2)

    def __call__(self, sequence: jax.Array, start_position=0) -> jax.Array:
        B, H, S, D = sequence.shape
        Dh = D // 2
        BH = B * H

        # Interleaved activation goes straight into the kernel (free reshape).
        x = sequence.reshape(BH, S, D)

        # Table slice for [start, start+S); dynamic_slice keeps one compile for
        # any (possibly traced) start_position.
        cos_h = jax.lax.dynamic_slice_in_dim(self.cos[:, :Dh], start_position, S, axis=0)
        sin_h = jax.lax.dynamic_slice_in_dim(self.sin[:, :Dh], start_position, S, axis=0)
        # Full-width (lane-dense) interleaved tables, sign folded into sin.
        cos_f = jnp.repeat(cos_h, 2, axis=-1).astype(sequence.dtype)            # (S, D)
        sin_f = jnp.stack([-sin_h, sin_h], axis=-1).reshape(S, D).astype(sequence.dtype)

        itemsize = jnp.dtype(sequence.dtype).itemsize
        s_tile = _pick_s_tile(S)
        n_s = S // s_tile
        bh_tile = _pick_bh_tile(BH, s_tile, D, itemsize, n_s)
        n_bh = BH // bh_tile

        x_spec = pl.BlockSpec((bh_tile, s_tile, D), lambda i, j: (i, j, 0))
        tab_spec = pl.BlockSpec((s_tile, D), lambda i, j: (j, 0))

        out = pl.pallas_call(
            _rope_kernel,
            out_shape=jax.ShapeDtypeStruct((BH, S, D), sequence.dtype),
            grid=(n_bh, n_s),
            in_specs=[x_spec, tab_spec, tab_spec],
            out_specs=x_spec,
            compiler_params=pltpu.CompilerParams(
                dimension_semantics=("parallel", "parallel"),
                vmem_limit_bytes=32 * 1024 * 1024),
        )(x, cos_f, sin_f)

        return out.reshape(B, H, S, D)


def _reference(x, cos, sin, start_position=0):
    """Pure-JAX complex reference mirroring the PyTorch forward."""
    B, H, S, D = x.shape
    Dh = D // 2
    xr = x.reshape(B, H, S, Dh, 2)
    xc = jax.lax.complex(xr[..., 0], xr[..., 1])
    emb = jax.lax.complex(cos, sin)[start_position:start_position + S, :Dh]
    out = xc * emb
    return jnp.stack([out.real, out.imag], axis=-1).reshape(B, H, S, D)


if __name__ == "__main__":
    # llama3-style head_dim=128 keeps the lane axis full-width (unmasked stores).
    B, H, S, D = 2, 4, 8, 128
    seq_limit = 16

    rope = RotatoryPositionalEncoding(model_dimension=D,
                                      sequence_lenght_limit=seq_limit)

    key = jax.random.PRNGKey(0)
    x = jax.random.normal(key, (B, H, S, D), dtype=jnp.float32)

    out = rope(x, start_position=0)
    out = jax.block_until_ready(out)

    ref = _reference(x, rope.cos, rope.sin, start_position=0)
    assert out.shape == x.shape and out.dtype == x.dtype
    assert jnp.allclose(out, ref, atol=1e-5, rtol=1e-5), "mismatch vs reference"

    print("KERNEL_OK")
</pallas_src>

<mosaic_0001>
module attributes {stable_mosaic.version = 11 : i64} {
  func.func @_rope_kernel(%arg0: i32, %arg1: i32, %arg2: memref<4x8x128xf32, #tpu.memory_space<vmem>>, %arg3: memref<8x128xf32, #tpu.memory_space<vmem>>, %arg4: memref<8x128xf32, #tpu.memory_space<vmem>>, %arg5: memref<4x8x128xf32, #tpu.memory_space<vmem>>) attributes {dimension_semantics = [#tpu.dimension_semantics<parallel>, #tpu.dimension_semantics<parallel>], iteration_bounds = array<i64: 2, 1>, scalar_prefetch = 0 : i64, scratch_operands = 0 : i64, tpu.core_type = #tpu.core_type<tc>, window_params = [{transform_indices = @transform_0, window_bounds = array<i64: 4, 8, 128>}, {transform_indices = @transform_1, window_bounds = array<i64: 8, 128>}, {transform_indices = @transform_2, window_bounds = array<i64: 8, 128>}, {transform_indices = @transform_3, window_bounds = array<i64: 4, 8, 128>}]} {
    %c0 = arith.constant 0 : index
    %c0_0 = arith.constant 0 : index
    %c0_1 = arith.constant 0 : index
    %0 = vector.load %arg2[%c0, %c0_0, %c0_1] : memref<4x8x128xf32, #tpu.memory_space<vmem>>, vector<4x8x128xf32>
    %c1_i32 = arith.constant 1 : i32
    %1 = tpu.dynamic_rotate %0 by %c1_i32 dim 2 : vector<4x8x128xf32>, i32 -> vector<4x8x128xf32>
    %c127_i32 = arith.constant 127 : i32
    %2 = tpu.dynamic_rotate %0 by %c127_i32 dim 2 : vector<4x8x128xf32>, i32 -> vector<4x8x128xf32>
    %3 = tpu.iota {dimensions = array<i32: 2>} : vector<4x8x128xi32>
    %c1_i32_2 = arith.constant 1 : i32
    %4 = vector.broadcast %c1_i32_2 : i32 to vector<4x8x128xi32>
    %5 = arith.andi %3, %4 : vector<4x8x128xi32>
    %c0_i32 = arith.constant 0 : i32
    %6 = vector.broadcast %c0_i32 : i32 to vector<4x8x128xi32>
    %7 = arith.cmpi eq, %5, %6 : vector<4x8x128xi32>
    %8 = arith.select %7, %2, %1 : vector<4x8x128xi1>, vector<4x8x128xf32>
    %c0_3 = arith.constant 0 : index
    %c0_4 = arith.constant 0 : index
    %9 = vector.load %arg3[%c0_3, %c0_4] : memref<8x128xf32, #tpu.memory_space<vmem>>, vector<8x128xf32>
    %10 = vector.shape_cast %9 : vector<8x128xf32> to vector<1x8x128xf32>
    %c0_5 = arith.constant 0 : index
    %c0_6 = arith.constant 0 : index
    %11 = vector.load %arg4[%c0_5, %c0_6] : memref<8x128xf32, #tpu.memory_space<vmem>>, vector<8x128xf32>
    %12 = vector.shape_cast %11 : vector<8x128xf32> to vector<1x8x128xf32>
    %13 = vector.broadcast %10 : vector<1x8x128xf32> to vector<4x8x128xf32>
    %14 = arith.mulf %0, %13 : vector<4x8x128xf32>
    %15 = vector.broadcast %12 : vector<1x8x128xf32> to vector<4x8x128xf32>
    %16 = arith.mulf %8, %15 : vector<4x8x128xf32>
    %17 = arith.addf %14, %16 : vector<4x8x128xf32>
    %c0_7 = arith.constant 0 : index
    %c0_8 = arith.constant 0 : index
    %c0_9 = arith.constant 0 : index
    %18 = vector.load %arg5[%c0_7, %c0_8, %c0_9] : memref<4x8x128xf32, #tpu.memory_space<vmem>>, vector<4x8x128xf32>
    tpu.vector_store %arg5[%c0_7, %c0_8, %c0_9], %17 {strides = array<i32>} : memref<4x8x128xf32, #tpu.memory_space<vmem>>, vector<4x8x128xf32>,
    return
  }
  func.func @transform_0(%arg0: i32, %arg1: i32) -> (i32, i32, i32) {
    %c0_i32 = arith.constant 0 : i32
    %c0_i32_0 = arith.constant 0 : i32
    return %arg0, %arg1, %c0_i32 : i32, i32, i32
  }
  func.func @transform_1(%arg0: i32, %arg1: i32) -> (i32, i32) {
    %c0_i32 = arith.constant 0 : i32
    %c0_i32_0 = arith.constant 0 : i32
    return %arg1, %c0_i32 : i32, i32
  }
  func.func @transform_2(%arg0: i32, %arg1: i32) -> (i32, i32) {
    %c0_i32 = arith.constant 0 : i32
    %c0_i32_0 = arith.constant 0 : i32
    return %arg1, %c0_i32 : i32, i32
  }
  func.func @transform_3(%arg0: i32, %arg1: i32) -> (i32, i32, i32) {
    %c0_i32 = arith.constant 0 : i32
    %c0_i32_0 = arith.constant 0 : i32
    return %arg0, %arg1, %c0_i32 : i32, i32, i32
  }
}

</mosaic_0001>

<llo_original>
// kernel: tpu_custom_call.1
$region0: #{tpu_custom_call.1}
  #allocation0 [shape = 'u32[]', space=smem, size = 0x4, offset = 0x4, fixed_abs, tag = 'smem constant byte address 0x4 - core index']
  #allocation1 [shape = 'u32[144,128]{1,0:T(1,128)}', space=vmem, size = 0x12000, scoped, tag = 'internal scratch']
  %s0 = inlined_call_operand.hbm [shape: f32[8,8,128], index: 0, kind: input, shape index: {}]
  %s1 = inlined_call_operand.hbm [shape: f32[8,128], index: 1, kind: input, shape index: {}]
  %s2 = inlined_call_operand.hbm [shape: f32[8,128], index: 2, kind: input, shape index: {}]
  %s3 = inlined_call_operand.hbm [shape: f32[8,8,128], index: 3, kind: output, shape index: {}]
  %s4 = sld [smem:[#allocation0]]
  $region57: #{tpu_custom_call.1} parent=0
    _
  %s6 = ssub.s32 1, %s4
  %s7 = scalar_select 0, %s6, %s4
  $region1: #{tpu_custom_call.1} parent=0
    #allocation2 [shape = 'u8[32768]{0}', space=vmem, size = 0x8000, scoped, tag = 'input window, operand 0']
    #allocation3 [shape = 's32[2]{0}', space=sflag, size = 0x8, scoped, tag = 'scoped memory for tpu_custom_call.1']
    #allocation4 [shape = 's32[2]{0}', space=sflag, size = 0x8, scoped, tag = 'scoped memory for tpu_custom_call.1']
    #allocation5 [shape = 'u8[4096]{0}', space=vmem, size = 0x1000, scoped, tag = 'input window, operand 1, single buffered']
    #allocation6 [shape = 's32[1]{0}', space=sflag, size = 0x4, scoped, tag = 'scoped memory for tpu_custom_call.1']
    #allocation7 [shape = 'u8[4096]{0}', space=vmem, size = 0x1000, scoped, tag = 'input window, operand 2, single buffered']
    #allocation8 [shape = 'u8[32768]{0}', space=vmem, size = 0x8000, scoped, tag = 'output window, operand 0']
    %8 = vsyncpa [#allocation3], 0
    %s9 = scalar_lea.sflag [#allocation3], 1
    %10 = vsyncpa %s9, 0
    %11 = vsyncpa [#allocation6], 0
    %12 = vsyncpa [#allocation4], 0
    %s13 = scalar_lea.sflag [#allocation4], 1
    %14 = vsyncpa %s13, 0
    loop: start=0, step=1, limit=4
    $region2: #{tpu_custom_call.1} parent=1 // loop_pre_header
      _
    $region3: #{tpu_custom_call.1} parent=1 // loop_header
      %s16 = sphi 0, %s20
      %p17 = scmp.ge.s32.totalorder %s16, 4
      %s23 = sphi 0, %s35
      %s24 = sphi 0, %s31
      %s25 = sphi 0, %s23
      %s26 = sphi 0, %s24
      %s27 = sphi 0, %s25
      %s28 = sphi 0, %s26
      %s40 = sphi 0, %s42
      %s43 = sphi 0, %s40
      %s44 = sphi 0, %s43
      %s60 = sphi 0, %s44
      %s66 = sphi 0, %s68
      %s69 = sphi 0, %s66
      %s70 = sphi 0, %s69
      %s86 = sphi 0, %s70
      %s92 = sphi 0, %s94
      %s95 = sphi 0, %s92
      %s96 = sphi 0, %s95
      %s112 = sphi 0, %s96
      %s120 = sphi 0, %s122
      %s123 = sphi 0, %s120
      %s124 = sphi 0, %s123
      %s140 = sphi 0, %s124
    $region4: #{tpu_custom_call.1} parent=1 // loop_header_branch
      %19 = sbr.rel (%p17) target = $region8
    $region5: #{tpu_custom_call.1} parent=1 // loop_body
      %s21 = ssub.s32 %s16, 1
      %s22 = ssub.s32 %s16, 2
      %s29 = sadd.s32 1, %s24
      %p30 = scmp.ge.s32.totalorder %s29, 1
      %s31 = scalar_select %p30, 0, %s29
      %s32 = sadd.s32 1, %s23
      %s33 = scalar_select %p30, %s32, %s23
      %p34 = scmp.ge.s32.totalorder %s33, 2
      %s35 = scalar_select %p34, 0, %s33
      %s36 = ssub.s32 %s23, %s35
      %s37 = ssub.s32 %s24, %s31
      %s38 = sor.u32 %s36, %s37
      %p39 = scmp.eq.s32.totalorder %s38, 0
      %s41 = sadd.s32 %s40, 1
      %s42 = scalar_select %p39, %s40, %s41
      %p45 = pneg %p39
      %p46 = scmp.eq.s32.totalorder %s16, 1
      %p47 = por %p45, %p46
      %p48 = scmp.ne.s32.totalorder %s40, %s43
      %p49 = scmp.eq.s32.totalorder %s16, 0
      %p50 = por %p48, %p49
      %p51 = scmp.ne.s32.totalorder %s40, %s43
      %p52 = scmp.eq.s32.totalorder %s21, 1
      %p53 = por %p51, %p52
      %p54 = scmp.ne.s32.totalorder %s43, %s44
      %p55 = scmp.eq.s32.totalorder %s21, 0
      %p56 = por %p54, %p55
      %p57 = scmp.ne.s32.totalorder %s43, %s44
      %p58 = scmp.eq.s32.totalorder %s22, 1
      %p59 = por %p57, %p58
      %p61 = scmp.ne.s32.totalorder %s44, %s60
      %p62 = scmp.eq.s32.totalorder %s22, 0
      %p63 = por %p61, %p62
      %s64 = ssub.s32 %s24, %s31
      %p65 = scmp.eq.s32.totalorder %s64, 0
      %s67 = sadd.s32 %s66, 1
      %s68 = scalar_select %p65, %s66, %s67
      %p71 = pneg %p65
      %p72 = scmp.eq.s32.totalorder %s16, 1
      %p73 = por %p71, %p72
      %p74 = scmp.ne.s32.totalorder %s66, %s69
      %p75 = scmp.eq.s32.totalorder %s16, 0
      %p76 = por %p74, %p75
      %p77 = scmp.ne.s32.totalorder %s66, %s69
      %p78 = scmp.eq.s32.totalorder %s21, 1
      %p79 = por %p77, %p78
      %p80 = scmp.ne.s32.totalorder %s69, %s70
      %p81 = scmp.eq.s32.totalorder %s21, 0
      %p82 = por %p80, %p81
      %p83 = scmp.ne.s32.totalorder %s69, %s70
      %p84 = scmp.eq.s32.totalorder %s22, 1
      %p85 = por %p83, %p84
      %p87 = scmp.ne.s32.totalorder %s70, %s86
      %p88 = scmp.eq.s32.totalorder %s22, 0
      %p89 = por %p87, %p88
      %s90 = ssub.s32 %s24, %s31
      %p91 = scmp.eq.s32.totalorder %s90, 0
      %s93 = sadd.s32 %s92, 1
      %s94 = scalar_select %p91, %s92, %s93
      %p97 = pneg %p91
      %p98 = scmp.eq.s32.totalorder %s16, 1
      %p99 = por %p97, %p98
      %p100 = scmp.ne.s32.totalorder %s92, %s95
      %p101 = scmp.eq.s32.totalorder %s16, 0
      %p102 = por %p100, %p101
      %p103 = scmp.ne.s32.totalorder %s92, %s95
      %p104 = scmp.eq.s32.totalorder %s21, 1
      %p105 = por %p103, %p104
      %p106 = scmp.ne.s32.totalorder %s95, %s96
      %p107 = scmp.eq.s32.totalorder %s21, 0
      %p108 = por %p106, %p107
      %p109 = scmp.ne.s32.totalorder %s95, %s96
      %p110 = scmp.eq.s32.totalorder %s22, 1
      %p111 = por %p109, %p110
      %p113 = scmp.ne.s32.totalorder %s96, %s112
      %p114 = scmp.eq.s32.totalorder %s22, 0
      %p115 = por %p113, %p114
      %s116 = ssub.s32 %s23, %s35
      %s117 = ssub.s32 %s24, %s31
      %s118 = sor.u32 %s116, %s117
      %p119 = scmp.eq.s32.totalorder %s118, 0
      %s121 = sadd.s32 %s120, 1
      %s122 = scalar_select %p119, %s120, %s121
      %p125 = pneg %p119
      %p126 = scmp.eq.s32.totalorder %s16, 1
      %p127 = por %p125, %p126
      %p128 = scmp.ne.s32.totalorder %s120, %s123
      %p129 = scmp.eq.s32.totalorder %s16, 0
      %p130 = por %p128, %p129
      %p131 = scmp.ne.s32.totalorder %s120, %s123
      %p132 = scmp.eq.s32.totalorder %s21, 1
      %p133 = por %p131, %p132
      %p134 = scmp.ne.s32.totalorder %s123, %s124
      %p135 = scmp.eq.s32.totalorder %s21, 0
      %p136 = por %p134, %p135
      %p137 = scmp.ne.s32.totalorder %s123, %s124
      %p138 = scmp.eq.s32.totalorder %s22, 1
      %p139 = por %p137, %p138
      %p141 = scmp.ne.s32.totalorder %s124, %s140
      %p142 = scmp.eq.s32.totalorder %s22, 0
      %p143 = por %p141, %p142
      %p144 = scmp.le.s32.totalorder 1, %s16
      %p145 = scmp.lt.s32.totalorder %s16, 3
      %p146 = pnand %p144, %p145
      %p147 = pneg %p146
      // Predicated region
      $region9: #{tpu_custom_call.1} parent=5 // pred_check
        _
      $region10: #{tpu_custom_call.1} parent=5 // pred_check_branch
        %149 = sbr.rel (%p146) target = $region12
      $region11: #{tpu_custom_call.1} parent=5 // pred_region
        %s150 = ssub.s32 %s16, 1
        // Predicated region
        $region13: #{tpu_custom_call.1} parent=11 // pred_check
          %p151 = pneg %p82
        $region14: #{tpu_custom_call.1} parent=11 // pred_check_branch
          %153 = sbr.rel (%p151) target = $region16
        $region15: #{tpu_custom_call.1} parent=11 // pred_region
          %s155 = ssub.s32 128, 128
          %156 = vsyncadd [#allocation6], %s155
          %s157 = smul.addr %s26, 128
          %s158 = scalar_lea.hbm %s1, %s157
          %s160 = sshll.u32 [#allocation5], 4
          %s161 = int_to_ptr.vmem [resolvable:$true] %s160
          %163 = dma.hbm_to_vmem [thread:$0]  %s158, 128, %s161, [#allocation6]
        $region16: #{tpu_custom_call.1} parent=11 // pred_fallthru
          _
        // Predicated region
        $region17: #{tpu_custom_call.1} parent=11 // pred_check
          %p164 = pneg %p108
        $region18: #{tpu_custom_call.1} parent=11 // pred_check_branch
          %166 = sbr.rel (%p164) target = $region20
        $region19: #{tpu_custom_call.1} parent=11 // pred_region
          %s168 = ssub.s32 128, 128
          %169 = vsyncadd [#allocation6], %s168
          %s170 = smul.addr %s26, 128
          %s171 = scalar_lea.hbm %s2, %s170
          %s173 = sshll.u32 [#allocation7], 4
          %s174 = int_to_ptr.vmem [resolvable:$true] %s173
          %176 = dma.hbm_to_vmem [thread:$0]  %s171, 128, %s174, [#allocation6]
        $region20: #{tpu_custom_call.1} parent=11 // pred_fallthru
          _
      $region12: #{tpu_custom_call.1} parent=5 // pred_fallthru
        _
      %p177 = scmp.lt.s32.totalorder %s16, 2
      // Predicated region
      $region21: #{tpu_custom_call.1} parent=5 // pred_check
        %p178 = pneg %p177
      $region22: #{tpu_custom_call.1} parent=5 // pred_check_branch
        %180 = sbr.rel (%p178) target = $region24
      $region23: #{tpu_custom_call.1} parent=5 // pred_region
        // Predicated region
        $region25: #{tpu_custom_call.1} parent=23 // pred_check
          %p181 = pneg %p50
        $region26: #{tpu_custom_call.1} parent=23 // pred_check_branch
          %183 = sbr.rel (%p181) target = $region28
        $region27: #{tpu_custom_call.1} parent=23 // pred_region
          %s184 = sand.u32 %s40, 1
          %s185 = scalar_lea.sflag [#allocation3], %s184
          %s186 = sand.u32 %s40, 1
          %s187 = smul.addr %s186, 32
          %s188 = scalar_lea.vmem [#allocation2], %s187
          %s189 = smul.u32 4, %s23
          %s191 = ssub.s32 512, 512
          %192 = vsyncadd %s185, %s191
          %s193 = sadd.s32 %s24, %s189
          %s194 = smul.addr %s193, 128
          %s195 = scalar_lea.hbm %s0, %s194
          %s196 = sshll.u32 %s188, 4
          %s197 = int_to_ptr.vmem [resolvable:$true] %s196
          %202 = dma.hbm_to_vmem [thread:$0]  %s195, 512, %s197, %s185, 128, 128, 8
        $region28: #{tpu_custom_call.1} parent=23 // pred_fallthru
          _
      $region24: #{tpu_custom_call.1} parent=5 // pred_fallthru
        _
      %p203 = scmp.le.s32.totalorder 1, %s16
      %p204 = scmp.lt.s32.totalorder %s16, 3
      %p205 = pnand %p203, %p204
      %p206 = pneg %p205
      // Predicated region
      $region29: #{tpu_custom_call.1} parent=5 // pred_check
        _
      $region30: #{tpu_custom_call.1} parent=5 // pred_check_branch
        %208 = sbr.rel (%p205) target = $region32
      $region31: #{tpu_custom_call.1} parent=5 // pred_region
        %s209 = ssub.s32 %s16, 1
        %s210 = sand.u32 %s43, 1
        %s211 = scalar_lea.sflag [#allocation3], %s210
        %s212 = sand.u32 %s43, 1
        %s213 = smul.addr %s212, 32
        %s214 = scalar_lea.vmem [#allocation2], %s213
        // Predicated region
        $region33: #{tpu_custom_call.1} parent=31 // pred_check
          %p215 = pneg %p56
        $region34: #{tpu_custom_call.1} parent=31 // pred_check_branch
          %217 = sbr.rel (%p215) target = $region36
        $region35: #{tpu_custom_call.1} parent=31 // pred_region
          %218 = dma.done %s211, 512
        $region36: #{tpu_custom_call.1} parent=31 // pred_fallthru
          _
        // Predicated region
        $region37: #{tpu_custom_call.1} parent=31 // pred_check
          %p219 = pneg %p82
        $region38: #{tpu_custom_call.1} parent=31 // pred_check_branch
          %221 = sbr.rel (%p219) target = $region40
        $region39: #{tpu_custom_call.1} parent=31 // pred_region
          %222 = dma.done [#allocation6], 128
        $region40: #{tpu_custom_call.1} parent=31 // pred_fallthru
          _
        // Predicated region
        $region41: #{tpu_custom_call.1} parent=31 // pred_check
          %p223 = pneg %p108
        $region42: #{tpu_custom_call.1} parent=31 // pred_check_branch
          %225 = sbr.rel (%p223) target = $region44
        $region43: #{tpu_custom_call.1} parent=31 // pred_region
          %226 = dma.done [#allocation6], 128
        $region44: #{tpu_custom_call.1} parent=31 // pred_fallthru
          _
        %s227 = sand.u32 %s43, 1
        %s228 = scalar_lea.sflag [#allocation3], %s227
        %s229 = sand.u32 %s43, 1
        %s230 = smul.addr %s229, 32
        %s231 = scalar_lea.vmem [#allocation2], %s230
        %p232 = pneg %p56
        %p233 = pneg %p53
        %p234 = pneg %p82
        %p235 = pneg %p79
        %p236 = pneg %p108
        %p237 = pneg %p105
        %p238 = pneg %p136
        %p239 = pneg %p133
        %s240 = sand.u32 %s123, 1
        %s241 = scalar_lea.sflag [#allocation4], %s240
        %s242 = sand.u32 %s123, 1
        %s243 = smul.addr %s242, 32
        %s244 = scalar_lea.vmem [#allocation8], %s243
        %s245 = smul.u32 4, %s25
        %s246 = smul.u32 4, %s25
        %v247 = vld [vmem:[%s214] sm:$0xff]
        %v248 = vld [vmem:[%s214 + $0x8] sm:$0xff]
        %v249 = vld [vmem:[%s214 + $0x10] sm:$0xff]
        %v250 = vld [vmem:[%s214 + $0x18] sm:$0xff]
        %251 = vrot.lane.b32.xlu0 %v247, 1
        %v252 = vpop.permute.xlu0 %251
        %253 = vrot.lane.b32.xlu0 %v248, 1
        %v254 = vpop.permute.xlu0 %253
        %255 = vrot.lane.b32.xlu0 %v249, 1
        %v256 = vpop.permute.xlu0 %255
        %257 = vrot.lane.b32.xlu0 %v250, 1
        %v258 = vpop.permute.xlu0 %257
        %259 = vrot.lane.b32.xlu0 %v247, 127
        %v260 = vpop.permute.xlu0 %259
        %261 = vrot.lane.b32.xlu0 %v248, 127
        %v262 = vpop.permute.xlu0 %261
        %263 = vrot.lane.b32.xlu0 %v249, 127
        %v264 = vpop.permute.xlu0 %263
        %265 = vrot.lane.b32.xlu0 %v250, 127
        %v266 = vpop.permute.xlu0 %265
        %v267 = vlaneseq
        %v268 = vand.u32 %v267, 127
        %v269 = vand.u32 %v268, 1
        %vm270 = vcmp.eq.s32.totalorder %v269, 0
        %v271 = vsel %vm270, %v260, %v252
        %v272 = vsel %vm270, %v262, %v254
        %v273 = vsel %vm270, %v264, %v256
        %v274 = vsel %vm270, %v266, %v258
        %v275 = vld [vmem:[#allocation5] sm:$0xff]
        %v276 = vld [vmem:[#allocation7] sm:$0xff]
        %v277 = vmul.f32 %v247, %v275
        %v278 = vmul.f32 %v248, %v275
        %v279 = vmul.f32 %v249, %v275
        %v280 = vmul.f32 %v250, %v275
        %v281 = vmul.f32 %v271, %v276
        %v282 = vmul.f32 %v272, %v276
        %v283 = vmul.f32 %v273, %v276
        %v284 = vmul.f32 %v274, %v276
        %v285 = vadd.f32 %v277, %v281
        %v286 = vadd.f32 %v278, %v282
        %v287 = vadd.f32 %v279, %v283
        %v288 = vadd.f32 %v280, %v284
        %289 = vst [vmem:[%s244] sm:$0xff] %v285
        %290 = vst [vmem:[%s244 + $0x8] sm:$0xff] %v286
        %291 = vst [vmem:[%s244 + $0x10] sm:$0xff] %v287
        %292 = vst [vmem:[%s244 + $0x18] sm:$0xff] %v288
        %s293 = sand.u32 %s123, 1
        %s294 = scalar_lea.sflag [#allocation4], %s293
        %s295 = sand.u32 %s123, 1
        %s296 = smul.addr %s295, 32
        %s297 = scalar_lea.vmem [#allocation8], %s296
        // Predicated region
        $region45: #{tpu_custom_call.1} parent=31 // pred_check
          %p298 = pneg %p133
        $region46: #{tpu_custom_call.1} parent=31 // pred_check_branch
          %300 = sbr.rel (%p298) target = $region48
        $region47: #{tpu_custom_call.1} parent=31 // pred_region
          %s301 = smul.u32 4, %s25
          %s303 = ssub.s32 512, 512
          %304 = vsyncadd %s294, %s303
          %s305 = sadd.s32 %s26, %s301
          %s306 = smul.addr %s305, 128
          %s307 = scalar_lea.hbm %s3, %s306
          %s308 = sshll.u32 %s297, 4
          %s309 = int_to_ptr.vmem [resolvable:$true] %s308
          %314 = dma.vmem_to_hbm [thread:$0]  %s309, 512, %s307, %s294, 128, 128, 8
        $region48: #{tpu_custom_call.1} parent=31 // pred_fallthru
          _
      $region32: #{tpu_custom_call.1} parent=5 // pred_fallthru
        _
      %p315 = scmp.le.s32.totalorder 2, %s16
      // Predicated region
      $region49: #{tpu_custom_call.1} parent=5 // pred_check
        %p316 = pneg %p315
      $region50: #{tpu_custom_call.1} parent=5 // pred_check_branch
        %318 = sbr.rel (%p316) target = $region52
      $region51: #{tpu_custom_call.1} parent=5 // pred_region
        %s319 = ssub.s32 %s16, 2
        // Predicated region
        $region53: #{tpu_custom_call.1} parent=51 // pred_check
          %p320 = pneg %p139
        $region54: #{tpu_custom_call.1} parent=51 // pred_check_branch
          %322 = sbr.rel (%p320) target = $region56
        $region55: #{tpu_custom_call.1} parent=51 // pred_region
          %s323 = sand.u32 %s124, 1
          %s324 = scalar_lea.sflag [#allocation4], %s323
          %s325 = sand.u32 %s124, 1
          %s326 = smul.addr %s325, 32
          %s327 = scalar_lea.vmem [#allocation8], %s326
          %328 = dma.done %s324, 512
        $region56: #{tpu_custom_call.1} parent=51 // pred_fallthru
          _
      $region52: #{tpu_custom_call.1} parent=5 // pred_fallthru
        _
    $region6: #{tpu_custom_call.1} parent=1 // loop_footer
      %s20 = sadd.s32 1, %s16
    $region7: #{tpu_custom_call.1} parent=1 // loop_footer_branch
      %15 = sbr.rel target = $region3
    $region8: #{tpu_custom_call.1} parent=1 // loop_exit
      _
    %329 = vsyncpa [#allocation3], 1
    %s330 = scalar_lea.sflag [#allocation3], 1
    %331 = vsyncpa %s330, 1
    %332 = vsyncpa [#allocation6], 1
    %333 = vsyncpa [#allocation4], 1
    %s334 = scalar_lea.sflag [#allocation4], 1
    %335 = vsyncpa %s334, 1

</llo_original>
